<compile_context>
chip_gen: v7x
topology: tpu7x:2x2x1
jax: 0.10.0
libtpu: 0.0.40
codegen_flags: <defaults>
</compile_context>

<pallas_src>
import math
import jax
import jax.numpy as jnp
from jax import lax
from jax.experimental import pallas as pl
from jax.experimental.pallas import tpu as pltpu

# ---- config (small, consistent with the module) ----
B = 2                       # batch
T = 8                       # seq length (t <= max_len)
D = 32                      # emb_dim
N_HEAD = 4
HEAD_DIM = D // N_HEAD      # config.head_dim
NT = B * T                  # 16 rows (batches stacked along rows)
NR = N_HEAD * NT            # 64 merged (head, batch, time) rows
H3 = 3 * HEAD_DIM           # per-head fused q|k|v width (24)
NEG_INF = -1e30             # large finite negative (avoids any -inf/NaN hazard)

assert D == N_HEAD * HEAD_DIM


def attention_kernel(x_ref, wqkv_ref, bqkv_ref, wo_ref, bo_ref, mask_ref, o_ref):
    """Single-step kernel: flat fused QKV projection, merged-rows causal attention,
    per-head output projection, for all B*T rows at once."""
    x = x_ref[...].astype(jnp.float32)                                   # [NT, D]

    # (1) Fused QKV projection: one [16,32]@[32,96] MXU matmul + one bias add.
    #     Columns are head-major blocks of 24 = [q_h | k_h | v_h]; 1/sqrt(hd)
    #     is already folded into the q columns/bias (pack time).
    qkv = jnp.dot(x, wqkv_ref[...],
                  preferred_element_type=jnp.float32) + bqkv_ref[...]    # [NT, 96]

    # (2) Merge heads into rows: [NT, H*24] -> [H*NT, 24].
    #     Static lane slices + sublane-aligned concat (16 % 8 == 0); no transpose,
    #     no replication of x.
    qkv_m = jnp.concatenate(
        [qkv[:, h * H3:(h + 1) * H3] for h in range(N_HEAD)], axis=0)    # [NR, 24]
    q = qkv_m[:, 0:HEAD_DIM]                                             # [NR, hd]
    k = qkv_m[:, HEAD_DIM:2 * HEAD_DIM]                                  # [NR, hd]
    v = qkv_m[:, 2 * HEAD_DIM:3 * HEAD_DIM]                              # [NR, hd]

    # (3) Attention core: two un-batched dots over all heads/batches at once.
    s = jnp.einsum("qd,kd->qk", q, k,
                   preferred_element_type=jnp.float32)                   # [NR, NR]
    # Precomputed additive block-causal mask: 0 within each (head, batch) causal
    # block, -1e30 elsewhere (also kills cross-head / cross-batch products).
    s = s + mask_ref[...]

    # Numerically-stable softmax over 64-lane-dense rows (exact reciprocal to
    # keep the 1e-4 check).
    m = jnp.max(s, axis=-1, keepdims=True)
    p = jnp.exp(s - m)
    p = p * pl.reciprocal(jnp.sum(p, axis=-1, keepdims=True), approx=False)

    y = jnp.dot(p, v, preferred_element_type=jnp.float32)                # [NR, hd]

    # (4) Output projection: per-head partial products summed over heads
    #     (equivalent to concat(heads) @ Wo without an activation relayout).
    y_h = y.reshape(N_HEAD, NT, HEAD_DIM)                                # free leading split
    out_h = jnp.einsum("hne,hed->hnd", y_h, wo_ref[...],
                       preferred_element_type=jnp.float32)               # [H, NT, D]
    out = out_h[0] + out_h[1] + out_h[2] + out_h[3] + bo_ref[...]        # [NT, D]

    # TODO(synk): attn_dropout / output_dropout omitted (identity in eval mode).
    o_ref[...] = out.astype(o_ref.dtype)


def pack_attention_params(wq, bq, wk, bk, wv, bv, wo, bo):
    """One-time weight repacking (hoisted out of the per-call path).
    Weights stored [in, out] (torch Linear weight transposed), biases [1, D]."""
    scale = 1.0 / math.sqrt(HEAD_DIM)

    # Per-head column split: [D, H, hd]; fold the attention scale into Q.
    wq_h = (wq * scale).reshape(D, N_HEAD, HEAD_DIM)
    wk_h = wk.reshape(D, N_HEAD, HEAD_DIM)
    wv_h = wv.reshape(D, N_HEAD, HEAD_DIM)
    # Head-major fused QKV weight: columns = head-major blocks of [q|k|v] (24 wide).
    wqkv = jnp.concatenate([wq_h, wk_h, wv_h], axis=-1).reshape(D, N_HEAD * H3)

    bq_h = (bq * scale).reshape(N_HEAD, HEAD_DIM)
    bk_h = bk.reshape(N_HEAD, HEAD_DIM)
    bv_h = bv.reshape(N_HEAD, HEAD_DIM)
    bqkv_row = jnp.concatenate([bq_h, bk_h, bv_h], axis=-1).reshape(1, N_HEAD * H3)
    bqkv = jnp.tile(bqkv_row, (NT, 1))                                   # [NT, 96]

    wo_h = wo.reshape(N_HEAD, HEAD_DIM, D)                               # [H, hd, D]
    bo_m = jnp.tile(bo.reshape(1, D), (NT, 1))                           # [NT, D]

    # Additive block-causal mask over merged rows r = h*NT + b*T + t:
    # valid iff same 8-row (head, batch) block and t_col <= t_row.
    r = jnp.arange(NR)
    same_block = (r[:, None] // T) == (r[None, :] // T)
    causal = (r[None, :] % T) <= (r[:, None] % T)
    mask_add = jnp.where(same_block & causal, 0.0, NEG_INF).astype(jnp.float32)

    return (wqkv, bqkv, wo_h, bo_m, mask_add)


def attention_forward(x, packed):
    """x: [B, T, D]; packed = pack_attention_params(...) output."""
    wqkv, bqkv, wo_h, bo_m, mask_add = packed
    x2 = x.reshape(NT, D)     # stack batches along rows; mask keeps them independent
    vmem = pl.BlockSpec(memory_space=pltpu.MemorySpace.VMEM)
    out2 = pl.pallas_call(
        attention_kernel,
        out_shape=jax.ShapeDtypeStruct((NT, D), x.dtype),
        in_specs=[vmem, vmem, vmem, vmem, vmem, vmem],
        out_specs=vmem,
    )(x2, wqkv, bqkv, wo_h, bo_m, mask_add)
    return out2.reshape(B, T, D)


def reference_forward(x, wq, bq, wk, bk, wv, bv, wo, bo):
    """Pure-JAX reference mirroring the PyTorch forward (dropout = identity)."""
    b, t, d = x.shape
    q = (x @ wq + bq[0]).reshape(b, t, N_HEAD, HEAD_DIM).transpose(0, 2, 1, 3)
    k = (x @ wk + bk[0]).reshape(b, t, N_HEAD, HEAD_DIM).transpose(0, 2, 1, 3)
    v = (x @ wv + bv[0]).reshape(b, t, N_HEAD, HEAD_DIM).transpose(0, 2, 1, 3)
    attn = (q @ jnp.swapaxes(k, -2, -1)) * (1.0 / math.sqrt(HEAD_DIM))
    mask = jnp.tril(jnp.ones((t, t)))[None, None]
    attn = jnp.where(mask == 0, -jnp.inf, attn)
    attn = jax.nn.softmax(attn, axis=-1)
    y = (attn @ v).transpose(0, 2, 1, 3).reshape(b, t, d)
    return y @ wo + bo[0]


if __name__ == "__main__":
    key = jax.random.PRNGKey(0)
    keys = jax.random.split(key, 9)
    # deterministic parameter init (shapes per nn.Linear(emb_dim, emb_dim)); stored [in, out]
    init_w = lambda k: (jax.random.normal(k, (D, D), jnp.float32) * (1.0 / math.sqrt(D)))
    init_b = lambda k: (jax.random.normal(k, (1, D), jnp.float32) * 0.02)

    wq, wk, wv, wo = init_w(keys[0]), init_w(keys[1]), init_w(keys[2]), init_w(keys[3])
    bq, bk, bv, bo = init_b(keys[4]), init_b(keys[5]), init_b(keys[6]), init_b(keys[7])
    x = jax.random.normal(keys[8], (B, T, D), jnp.float32)

    # One-time layout prep (review item: hoist repacking out of the per-call path).
    packed = jax.tree_util.tree_map(jax.block_until_ready,
                                    pack_attention_params(wq, bq, wk, bk, wv, bv, wo, bo))

    fwd = jax.jit(attention_forward)
    out = fwd(x, packed)
    out = jax.block_until_ready(out)

    ref = reference_forward(x, wq, bq, wk, bk, wv, bv, wo, bo)
    assert out.shape == (B, T, D)
    assert jnp.allclose(out, ref, atol=1e-4, rtol=1e-4), "mismatch vs reference"
    print("KERNEL_OK")
</pallas_src>

<mosaic_0001>
module attributes {stable_mosaic.version = 11 : i64} {
  func.func @attention_kernel(%arg0: memref<16x32xf32, #tpu.memory_space<vmem>>, %arg1: memref<32x96xf32, #tpu.memory_space<vmem>>, %arg2: memref<16x96xf32, #tpu.memory_space<vmem>>, %arg3: memref<4x8x32xf32, #tpu.memory_space<vmem>>, %arg4: memref<16x32xf32, #tpu.memory_space<vmem>>, %arg5: memref<64x64xf32, #tpu.memory_space<vmem>>, %arg6: memref<16x32xf32, #tpu.memory_space<vmem>>) attributes {dimension_semantics = [], scalar_prefetch = 0 : i64, scratch_operands = 0 : i64, tpu.core_type = #tpu.core_type<tc>} {
    %c0 = arith.constant 0 : index
    %c0_0 = arith.constant 0 : index
    %0 = vector.load %arg0[%c0, %c0_0] : memref<16x32xf32, #tpu.memory_space<vmem>>, vector<16x32xf32>
    %c0_1 = arith.constant 0 : index
    %c0_2 = arith.constant 0 : index
    %1 = vector.load %arg1[%c0_1, %c0_2] : memref<32x96xf32, #tpu.memory_space<vmem>>, vector<32x96xf32>
    %cst = arith.constant dense<0.000000e+00> : vector<16x96xf32>
    %2 = tpu.matmul %0, %1, %cst {dimension_numbers = #tpu.dot_dimension_numbers<[1], [0], [0], [1], [0, 0, 1, 1], [], []>} : vector<16x32xf32>, vector<32x96xf32>, vector<16x96xf32> -> vector<16x96xf32>
    %c0_3 = arith.constant 0 : index
    %c0_4 = arith.constant 0 : index
    %3 = vector.load %arg2[%c0_3, %c0_4] : memref<16x96xf32, #tpu.memory_space<vmem>>, vector<16x96xf32>
    %4 = arith.addf %2, %3 : vector<16x96xf32>
    %5 = vector.extract_strided_slice %4 {offsets = [0, 0], sizes = [16, 24], strides = [1, 1]} : vector<16x96xf32> to vector<16x24xf32>
    %6 = vector.extract_strided_slice %4 {offsets = [0, 24], sizes = [16, 24], strides = [1, 1]} : vector<16x96xf32> to vector<16x24xf32>
    %7 = vector.extract_strided_slice %4 {offsets = [0, 48], sizes = [16, 24], strides = [1, 1]} : vector<16x96xf32> to vector<16x24xf32>
    %8 = vector.extract_strided_slice %4 {offsets = [0, 72], sizes = [16, 24], strides = [1, 1]} : vector<16x96xf32> to vector<16x24xf32>
    %9 = tpu.concatenate %5, %6, %7, %8 in 0 : vector<16x24xf32>, vector<16x24xf32>, vector<16x24xf32>, vector<16x24xf32> -> vector<64x24xf32>
    %10 = vector.extract_strided_slice %9 {offsets = [0, 0], sizes = [64, 8], strides = [1, 1]} : vector<64x24xf32> to vector<64x8xf32>
    %11 = vector.extract_strided_slice %9 {offsets = [0, 8], sizes = [64, 8], strides = [1, 1]} : vector<64x24xf32> to vector<64x8xf32>
    %12 = vector.extract_strided_slice %9 {offsets = [0, 16], sizes = [64, 8], strides = [1, 1]} : vector<64x24xf32> to vector<64x8xf32>
    "tpu.trace_start"() <{level = 10 : i32, message = "qd,kd->qk"}> : () -> ()
    %cst_5 = arith.constant dense<0.000000e+00> : vector<64x64xf32>
    %13 = tpu.matmul %10, %11, %cst_5 {dimension_numbers = #tpu.dot_dimension_numbers<[1], [1], [0], [0], [0, 0, 1, 0], [], []>} : vector<64x8xf32>, vector<64x8xf32>, vector<64x64xf32> -> vector<64x64xf32>
    "tpu.trace_stop"() : () -> ()
    %c0_6 = arith.constant 0 : index
    %c0_7 = arith.constant 0 : index
    %14 = vector.load %arg5[%c0_6, %c0_7] : memref<64x64xf32, #tpu.memory_space<vmem>>, vector<64x64xf32>
    %15 = arith.addf %13, %14 : vector<64x64xf32>
    %cst_8 = arith.constant dense<0xFF800000> : vector<64xf32>
    %16 = vector.multi_reduction <maximumf>, %15, %cst_8 [1] : vector<64x64xf32> to vector<64xf32>
    %17 = vector.shape_cast %16 : vector<64xf32> to vector<64x1xf32>
    %18 = vector.broadcast %17 : vector<64x1xf32> to vector<64x64xf32>
    %19 = arith.subf %15, %18 : vector<64x64xf32>
    %20 = math.exp %19 : vector<64x64xf32>
    %cst_9 = arith.constant dense<0.000000e+00> : vector<64xf32>
    %21 = vector.multi_reduction <add>, %20, %cst_9 [1] : vector<64x64xf32> to vector<64xf32>
    %22 = vector.shape_cast %21 : vector<64xf32> to vector<64x1xf32>
    %23 = tpu.reciprocal %22 : vector<64x1xf32> -> vector<64x1xf32>
    %24 = vector.broadcast %23 : vector<64x1xf32> to vector<64x64xf32>
    %25 = arith.mulf %20, %24 : vector<64x64xf32>
    %cst_10 = arith.constant dense<0.000000e+00> : vector<64x8xf32>
    %26 = tpu.matmul %25, %12, %cst_10 {dimension_numbers = #tpu.dot_dimension_numbers<[1], [0], [0], [1], [0, 0, 1, 1], [], []>} : vector<64x64xf32>, vector<64x8xf32>, vector<64x8xf32> -> vector<64x8xf32>
    %27 = vector.shape_cast %26 : vector<64x8xf32> to vector<4x16x8xf32>
    %c0_11 = arith.constant 0 : index
    %c0_12 = arith.constant 0 : index
    %c0_13 = arith.constant 0 : index
    %28 = vector.load %arg3[%c0_11, %c0_12, %c0_13] : memref<4x8x32xf32, #tpu.memory_space<vmem>>, vector<4x8x32xf32>
    "tpu.trace_start"() <{level = 10 : i32, message = "hne,hed->hnd"}> : () -> ()
    %cst_14 = arith.constant dense<0.000000e+00> : vector<4x16x32xf32>
    %29 = tpu.matmul %27, %28, %cst_14 {dimension_numbers = #tpu.dot_dimension_numbers<[2], [1], [1], [2], [0, 0, 0, 1, 1, 2], [0], [0]>} : vector<4x16x8xf32>, vector<4x8x32xf32>, vector<4x16x32xf32> -> vector<4x16x32xf32>
    "tpu.trace_stop"() : () -> ()
    %30 = vector.extract_strided_slice %29 {offsets = [0, 0, 0], sizes = [1, 16, 32], strides = [1, 1, 1]} : vector<4x16x32xf32> to vector<1x16x32xf32>
    %31 = vector.shape_cast %30 : vector<1x16x32xf32> to vector<16x32xf32>
    %32 = vector.extract_strided_slice %29 {offsets = [1, 0, 0], sizes = [1, 16, 32], strides = [1, 1, 1]} : vector<4x16x32xf32> to vector<1x16x32xf32>
    %33 = vector.shape_cast %32 : vector<1x16x32xf32> to vector<16x32xf32>
    %34 = arith.addf %31, %33 : vector<16x32xf32>
    %35 = vector.extract_strided_slice %29 {offsets = [2, 0, 0], sizes = [1, 16, 32], strides = [1, 1, 1]} : vector<4x16x32xf32> to vector<1x16x32xf32>
    %36 = vector.shape_cast %35 : vector<1x16x32xf32> to vector<16x32xf32>
    %37 = arith.addf %34, %36 : vector<16x32xf32>
    %38 = vector.extract_strided_slice %29 {offsets = [3, 0, 0], sizes = [1, 16, 32], strides = [1, 1, 1]} : vector<4x16x32xf32> to vector<1x16x32xf32>
    %39 = vector.shape_cast %38 : vector<1x16x32xf32> to vector<16x32xf32>
    %40 = arith.addf %37, %39 : vector<16x32xf32>
    %c0_15 = arith.constant 0 : index
    %c0_16 = arith.constant 0 : index
    %41 = vector.load %arg4[%c0_15, %c0_16] : memref<16x32xf32, #tpu.memory_space<vmem>>, vector<16x32xf32>
    %42 = arith.addf %40, %41 : vector<16x32xf32>
    %c0_17 = arith.constant 0 : index
    %c0_18 = arith.constant 0 : index
    %43 = vector.load %arg6[%c0_17, %c0_18] : memref<16x32xf32, #tpu.memory_space<vmem>>, vector<16x32xf32>
    tpu.vector_store %arg6[%c0_17, %c0_18], %42 {strides = array<i32>} : memref<16x32xf32, #tpu.memory_space<vmem>>, vector<16x32xf32>,
    return
  }
}

</mosaic_0001>

<llo_original>
// kernel: attention_forward.1
$region0: #{attention_forward.1}
  #allocation0 [shape = 'u32[]', space=smem, size = 0x4, offset = 0x4, fixed_abs, tag = 'smem constant byte address 0x4 - core index']
  #allocation1 [shape = 'u32[144,128]{1,0:T(1,128)}', space=vmem, size = 0x12000, scoped, tag = 'internal scratch']
  %s0 = inlined_call_operand.hbm [shape: f32[16,32], index: 0, kind: input, shape index: {}]
  %s1 = inlined_call_operand.hbm [shape: f32[32,96], index: 1, kind: input, shape index: {}]
  %s2 = inlined_call_operand.hbm [shape: f32[16,96], index: 2, kind: input, shape index: {}]
  %s3 = inlined_call_operand.hbm [shape: f32[4,8,32], index: 3, kind: input, shape index: {}]
  %s4 = inlined_call_operand.vmem [shape: f32[16,32], index: 4, kind: input, shape index: {}]
  %s5 = inlined_call_operand.hbm [shape: f32[64,64], index: 5, kind: input, shape index: {}]
  %s6 = inlined_call_operand.hbm [shape: f32[16,32], index: 6, kind: output, shape index: {}]
  %s7 = sld [smem:[#allocation0]]
  $region54: #{attention_forward.1} parent=0
    _
  %s9 = ssub.s32 1, %s7
  %s10 = scalar_select 0, %s9, %s7
  $region1: #{attention_forward.1} parent=0
    #allocation2 [shape = 'u8[8192]{0}', space=vmem, size = 0x2000, scoped, tag = 'input window, operand 0, single buffered']
    #allocation3 [shape = 's32[1]{0}', space=sflag, size = 0x4, scoped, tag = 'scoped memory for attention_forward.1']
    #allocation4 [shape = 's32[1]{0}', space=sflag, size = 0x4, scoped, tag = 'scoped memory for attention_forward.1']
    #allocation5 [shape = 'u8[16384]{0}', space=vmem, size = 0x4000, scoped, tag = 'input window, operand 1, single buffered']
    #allocation6 [shape = 's32[1]{0}', space=sflag, size = 0x4, scoped, tag = 'scoped memory for attention_forward.1']
    #allocation7 [shape = 'u8[8192]{0}', space=vmem, size = 0x2000, scoped, tag = 'input window, operand 2, single buffered']
    #allocation8 [shape = 'u8[16384]{0}', space=vmem, size = 0x4000, scoped, tag = 'input window, operand 3, single buffered']
    #allocation9 [shape = 's32[1]{0}', space=sflag, size = 0x4, scoped, tag = 'scoped memory for attention_forward.1']
    #allocation10 [shape = 'u8[32768]{0}', space=vmem, size = 0x8000, scoped, tag = 'input window, operand 5, single buffered']
    #allocation11 [shape = 'u8[8192]{0}', space=vmem, size = 0x2000, scoped, tag = 'output window, operand 0, single buffered']
    %11 = vsyncpa [#allocation3], 0
    %12 = vsyncpa [#allocation6], 0
    %13 = vsyncpa [#allocation9], 0
    %14 = vsyncpa [#allocation4], 0
    // Predicated region
    $region2: #{attention_forward.1} parent=1 // pred_check
      _
    $region3: #{attention_forward.1} parent=1 // pred_check_branch
      %16 = sbr.rel (0) target = $region5
    $region4: #{attention_forward.1} parent=1 // pred_region
      %s18 = ssub.s32 256, 256
      %19 = vsyncadd [#allocation3], %s18
      %s20 = sshll.u32 [#allocation2], 4
      %s21 = int_to_ptr.vmem [resolvable:$true] %s20
      %26 = dma.hbm_to_vmem [thread:$0]  %s0, 256, %s21, [#allocation3], 128, 128, 8
    $region5: #{attention_forward.1} parent=1 // pred_fallthru
      _
    // Predicated region
    $region6: #{attention_forward.1} parent=1 // pred_check
      _
    $region7: #{attention_forward.1} parent=1 // pred_check_branch
      %28 = sbr.rel (0) target = $region9
    $region8: #{attention_forward.1} parent=1 // pred_region
      %s30 = ssub.s32 512, 512
      %31 = vsyncadd [#allocation6], %s30
      %s32 = sshll.u32 [#allocation5], 4
      %s33 = int_to_ptr.vmem [resolvable:$true] %s32
      %38 = dma.hbm_to_vmem [thread:$0]  %s1, 512, %s33, [#allocation6], 128, 128, 8
    $region9: #{attention_forward.1} parent=1 // pred_fallthru
      _
    // Predicated region
    $region10: #{attention_forward.1} parent=1 // pred_check
      _
    $region11: #{attention_forward.1} parent=1 // pred_check_branch
      %40 = sbr.rel (0) target = $region13
    $region12: #{attention_forward.1} parent=1 // pred_region
      %s42 = ssub.s32 256, 256
      %43 = vsyncadd [#allocation6], %s42
      %s44 = sshll.u32 [#allocation7], 4
      %s45 = int_to_ptr.vmem [resolvable:$true] %s44
      %50 = dma.hbm_to_vmem [thread:$0]  %s2, 256, %s45, [#allocation6], 128, 128, 8
    $region13: #{attention_forward.1} parent=1 // pred_fallthru
      _
    // Predicated region
    $region14: #{attention_forward.1} parent=1 // pred_check
      _
    $region15: #{attention_forward.1} parent=1 // pred_check_branch
      %52 = sbr.rel (0) target = $region17
    $region16: #{attention_forward.1} parent=1 // pred_region
      %s54 = ssub.s32 512, 512
      %55 = vsyncadd [#allocation9], %s54
      %s56 = sshll.u32 [#allocation8], 4
      %s57 = int_to_ptr.vmem [resolvable:$true] %s56
      %62 = dma.hbm_to_vmem [thread:$0]  %s3, 512, %s57, [#allocation9], 128, 128, 8
    $region17: #{attention_forward.1} parent=1 // pred_fallthru
      _
    // Predicated region
    $region18: #{attention_forward.1} parent=1 // pred_check
      _
    $region19: #{attention_forward.1} parent=1 // pred_check_branch
      %64 = sbr.rel (0) target = $region21
    $region20: #{attention_forward.1} parent=1 // pred_region
      _
    $region21: #{attention_forward.1} parent=1 // pred_fallthru
      _
    // Predicated region
    $region22: #{attention_forward.1} parent=1 // pred_check
      _
    $region23: #{attention_forward.1} parent=1 // pred_check_branch
      %66 = sbr.rel (0) target = $region25
    $region24: #{attention_forward.1} parent=1 // pred_region
      %s68 = ssub.s32 1024, 1024
      %69 = vsyncadd [#allocation9], %s68
      %s70 = sshll.u32 [#allocation10], 4
      %s71 = int_to_ptr.vmem [resolvable:$true] %s70
      %76 = dma.hbm_to_vmem [thread:$0]  %s5, 1024, %s71, [#allocation9], 128, 128, 8
    $region25: #{attention_forward.1} parent=1 // pred_fallthru
      _
    // Predicated region
    $region26: #{attention_forward.1} parent=1 // pred_check
      _
    $region27: #{attention_forward.1} parent=1 // pred_check_branch
      %78 = sbr.rel (0) target = $region29
    $region28: #{attention_forward.1} parent=1 // pred_region
      %79 = dma.done [#allocation3], 256
    $region29: #{attention_forward.1} parent=1 // pred_fallthru
      _
    // Predicated region
    $region30: #{attention_forward.1} parent=1 // pred_check
      _
    $region31: #{attention_forward.1} parent=1 // pred_check_branch
      %81 = sbr.rel (0) target = $region33
    $region32: #{attention_forward.1} parent=1 // pred_region
      %82 = dma.done [#allocation6], 512
    $region33: #{attention_forward.1} parent=1 // pred_fallthru
      _
    // Predicated region
    $region34: #{attention_forward.1} parent=1 // pred_check
      _
    $region35: #{attention_forward.1} parent=1 // pred_check_branch
      %84 = sbr.rel (0) target = $region37
    $region36: #{attention_forward.1} parent=1 // pred_region
      %85 = dma.done [#allocation6], 256
    $region37: #{attention_forward.1} parent=1 // pred_fallthru
      _
    // Predicated region
    $region38: #{attention_forward.1} parent=1 // pred_check
      _
    $region39: #{attention_forward.1} parent=1 // pred_check_branch
      %87 = sbr.rel (0) target = $region41
    $region40: #{attention_forward.1} parent=1 // pred_region
      %88 = dma.done [#allocation9], 512
    $region41: #{attention_forward.1} parent=1 // pred_fallthru
      _
    // Predicated region
    $region42: #{attention_forward.1} parent=1 // pred_check
      _
    $region43: #{attention_forward.1} parent=1 // pred_check_branch
      %90 = sbr.rel (0) target = $region45
    $region44: #{attention_forward.1} parent=1 // pred_region
      %91 = dma.done [#allocation9], 1024
    $region45: #{attention_forward.1} parent=1 // pred_fallthru
      _
    %v92 = vld [vmem:[#allocation2] sm:$0xff]
    %v93 = vld [vmem:[#allocation2 + $0x8] sm:$0xff]
    %v94 = vld [vmem:[#allocation5] sm:$0xff]
    %v95 = vld [vmem:[#allocation5 + $0x8] sm:$0xff]
    %v96 = vld [vmem:[#allocation5 + $0x10] sm:$0xff]
    %v97 = vld [vmem:[#allocation5 + $0x18] sm:$0xff]
    %v98 = vld [vmem:[#allocation7] sm:$0xff]
    %v99 = vld [vmem:[#allocation7 + $0x8] sm:$0xff]
    %vm100 = vcmask 261120
    %v102 = vsel %vm100, %v92, 0
    %v105 = vsel %vm100, %v93, 0
    %107 = vmatprep.subr.mxu0 0.0
    %108 = vmatpush1.msra.mxu0 %v94
    %109 = vmatprep.subr.mxu0 0.0
    %110 = vmatpush1.msra.mxu0 %v95
    %111 = vmatprep.subr.mxu0 0.0
    %112 = vmatpush1.msra.mxu0 %v96
    %113 = vmatprep.subr.mxu0 0.0
    %114 = vmatpush1.msra.mxu0 %v97
    %115 = vmatprep.subr.mxu0 0.0
    %116 = vmatpush1.msra.mxu0 0.0
    %117 = vmatprep.subr.mxu0 0.0
    %118 = vmatpush1.msra.mxu0 0.0
    %119 = vmatprep.subr.mxu0 0.0
    %120 = vmatpush1.msra.mxu0 0.0
    %121 = vmatprep.subr.mxu0 0.0
    %122 = vmatpush1.msra.mxu0 0.0
    %123 = vmatprep.subr.mxu0 0.0
    %124 = vmatpush1.msra.mxu0 0.0
    %125 = vmatprep.subr.mxu0 0.0
    %126 = vmatpush1.msra.mxu0 0.0
    %127 = vmatprep.subr.mxu0 0.0
    %128 = vmatpush1.msra.mxu0 0.0
    %129 = vmatprep.subr.mxu0 0.0
    %130 = vmatpush1.msra.mxu0 0.0
    %131 = vmatprep.subr.mxu0 0.0
    %132 = vmatpush1.msra.mxu0 0.0
    %133 = vmatprep.subr.mxu0 0.0
    %134 = vmatpush1.msra.mxu0 0.0
    %135 = vmatprep.subr.mxu0 0.0
    %136 = vmatpush1.msra.mxu0 0.0
    %137 = vmatprep.subr.mxu0 0.0
    %138 = vmatpush1.msra.mxu0 0.0
    %139 = vmatprep.subr.mxu0 0.0
    %140 = vmatpush1.msra.mxu0 0.0
    %141 = vmatprep.subr.mxu0 0.0
    %142 = vmatpush1.msra.mxu0 0.0
    %143 = vmatprep.subr.mxu0 0.0
    %144 = vmatpush1.msra.mxu0 0.0
    %145 = vmatprep.subr.mxu0 0.0
    %146 = vmatpush1.msra.mxu0 0.0
    %147 = vmatprep.subr.mxu0 0.0
    %148 = vmatpush1.msra.mxu0 0.0
    %149 = vmatprep.subr.mxu0 0.0
    %150 = vmatpush1.msra.mxu0 0.0
    %151 = vmatprep.subr.mxu0 0.0
    %152 = vmatpush1.msra.mxu0 0.0
    %153 = vmatprep.subr.mxu0 0.0
    %154 = vmatpush1.msra.mxu0 0.0
    %155 = vmatprep.subr.mxu0 0.0
    %156 = vmatpush1.msra.mxu0 0.0
    %157 = vmatprep.subr.mxu0 0.0
    %158 = vmatpush1.msra.mxu0 0.0
    %159 = vmatprep.subr.mxu0 0.0
    %160 = vmatpush1.msra.mxu0 0.0
    %161 = vmatprep.subr.mxu0 0.0
    %162 = vmatpush1.msra.mxu0 0.0
    %163 = vmatprep.subr.mxu0 0.0
    %164 = vmatpush1.msra.mxu0 0.0
    %165 = vmatprep.subr.mxu0 0.0
    %166 = vmatpush1.msra.mxu0 0.0
    %167 = vmatprep.subr.mxu0 0.0
    %168 = vmatpush1.msra.mxu0 0.0
    %169 = vmatprep.subr.mxu0 0.0
    %170 = vmatpush1.msra.mxu0 0.0
    %171 = vmatprep.mubr.f32.mxu0 0.0
    %172 = vmatmul.mubr.f32.gmra.mrb[0].mxu0 %v102
    %v173 = vpop.f32.mrb[0].mxu0
    %v174 = vadd.f32 %v98, %v173
    %v175 = vpop.f32.mrb[0].mxu0
    %176 = vmatprep.mubr.f32.mxu0 0.0
    %177 = vmatmul.mubr.f32.gmra.mrb[0].mxu0 %v105
    %v178 = vpop.f32.mrb[0].mxu0
    %v179 = vadd.f32 %v99, %v178
    %v180 = vpop.f32.mrb[0].mxu0
    %181 = vdwg.mxu0
    %184 = vrot.lane.b32.xlu0 %v174, 104
    %v185 = vpop.permute.xlu0 %184
    %186 = vrot.lane.b32.xlu0 %v179, 104
    %v187 = vpop.permute.xlu0 %186
    %188 = vrot.lane.b32.xlu0 %v174, 80
    %v189 = vpop.permute.xlu0 %188
    %190 = vrot.lane.b32.xlu0 %v179, 80
    %v191 = vpop.permute.xlu0 %190
    %192 = vrot.lane.b32.xlu0 %v174, 56
    %v193 = vpop.permute.xlu0 %192
    %194 = vrot.lane.b32.xlu0 %v179, 56
    %v195 = vpop.permute.xlu0 %194
    %v196 = vld [vmem:[#allocation10] sm:$0xff]
    %v197 = vld [vmem:[#allocation10 + $0x8] sm:$0xff]
    %v198 = vld [vmem:[#allocation10 + $0x10] sm:$0xff]
    %v199 = vld [vmem:[#allocation10 + $0x18] sm:$0xff]
    %v200 = vld [vmem:[#allocation10 + $0x20] sm:$0xff]
    %v201 = vld [vmem:[#allocation10 + $0x28] sm:$0xff]
    %v202 = vld [vmem:[#allocation10 + $0x30] sm:$0xff]
    %v203 = vld [vmem:[#allocation10 + $0x38] sm:$0xff]
    %204 = vrot.lane.b32.xlu0 %v174, 120
    %v205 = vpop.permute.xlu0 %204
    %206 = vrot.lane.b32.xlu0 %v179, 120
    %v207 = vpop.permute.xlu0 %206
    %208 = vrot.lane.b32.xlu0 %v185, 120
    %v209 = vpop.permute.xlu0 %208
    %210 = vrot.lane.b32.xlu0 %v187, 120
    %v211 = vpop.permute.xlu0 %210
    %212 = vrot.lane.b32.xlu0 %v189, 120
    %v213 = vpop.permute.xlu0 %212
    %214 = vrot.lane.b32.xlu0 %v191, 120
    %v215 = vpop.permute.xlu0 %214
    %216 = vrot.lane.b32.xlu0 %v193, 120
    %v217 = vpop.permute.xlu0 %216
    %218 = vrot.lane.b32.xlu0 %v195, 120
    %v219 = vpop.permute.xlu0 %218
    %vm220 = vcmask 64512
    %v221 = vsel %vm220, %v174, 0
    %v223 = vsel %vm220, %v179, 0
    %v225 = vsel %vm220, %v185, 0
    %v227 = vsel %vm220, %v187, 0
    %v229 = vsel %vm220, %v189, 0
    %v231 = vsel %vm220, %v191, 0
    %v233 = vsel %vm220, %v193, 0
    %v235 = vsel %vm220, %v195, 0
    %v237 = vsel %vm220, %v205, 0
    %v239 = vsel %vm220, %v207, 0
    %v241 = vsel %vm220, %v209, 0
    %v243 = vsel %vm220, %v211, 0
    %v245 = vsel %vm220, %v213, 0
    %v247 = vsel %vm220, %v215, 0
    %v249 = vsel %vm220, %v217, 0
    %v251 = vsel %vm220, %v219, 0
    %253 = vmatprep.subr.mxu0 0.0
    %254 = vmatpush1.xpose.msra.mxu0 %v237
    %255 = vmatprep.subr.mxu0 0.0
    %256 = vmatpush1.xpose.msra.mxu0 %v239
    %257 = vmatprep.subr.mxu0 0.0
    %258 = vmatpush1.xpose.msra.mxu0 %v241
    %259 = vmatprep.subr.mxu0 0.0
    %260 = vmatpush1.xpose.msra.mxu0 %v243
    %261 = vmatprep.subr.mxu0 0.0
    %262 = vmatpush1.xpose.msra.mxu0 %v245
    %263 = vmatprep.subr.mxu0 0.0
    %264 = vmatpush1.xpose.msra.mxu0 %v247
    %265 = vmatprep.subr.mxu0 0.0
    %266 = vmatpush1.xpose.msra.mxu0 %v249
    %267 = vmatprep.subr.mxu0 0.0
    %268 = vmatpush1.xpose.msra.mxu0 %v251
    %269 = vmatprep.subr.mxu0 0.0
    %270 = vmatpush1.xpose.msra.mxu0 0.0
    %271 = vmatprep.subr.mxu0 0.0
    %272 = vmatpush1.xpose.msra.mxu0 0.0
    %273 = vmatprep.subr.mxu0 0.0
    %274 = vmatpush1.xpose.msra.mxu0 0.0
    %275 = vmatprep.subr.mxu0 0.0
    %276 = vmatpush1.xpose.msra.mxu0 0.0
    %277 = vmatprep.subr.mxu0 0.0
    %278 = vmatpush1.xpose.msra.mxu0 0.0
    %279 = vmatprep.subr.mxu0 0.0
    %280 = vmatpush1.xpose.msra.mxu0 0.0
    %281 = vmatprep.subr.mxu0 0.0
    %282 = vmatpush1.xpose.msra.mxu0 0.0
    %283 = vmatprep.subr.mxu0 0.0
    %284 = vmatpush1.xpose.msra.mxu0 0.0
    %285 = vmatprep.subr.mxu0 0.0
    %286 = vmatpush1.xpose.msra.mxu0 0.0
    %287 = vmatprep.subr.mxu0 0.0
    %288 = vmatpush1.xpose.msra.mxu0 0.0
    %289 = vmatprep.subr.mxu0 0.0
    %290 = vmatpush1.xpose.msra.mxu0 0.0
    %291 = vmatprep.subr.mxu0 0.0
    %292 = vmatpush1.xpose.msra.mxu0 0.0
    %293 = vmatprep.subr.mxu0 0.0
    %294 = vmatpush1.xpose.msra.mxu0 0.0
    %295 = vmatprep.subr.mxu0 0.0
    %296 = vmatpush1.xpose.msra.mxu0 0.0
    %297 = vmatprep.subr.mxu0 0.0
    %298 = vmatpush1.xpose.msra.mxu0 0.0
    %299 = vmatprep.subr.mxu0 0.0
    %300 = vmatpush1.xpose.msra.mxu0 0.0
    %301 = vmatprep.subr.mxu0 0.0
    %302 = vmatpush1.xpose.msra.mxu0 0.0
    %303 = vmatprep.subr.mxu0 0.0
    %304 = vmatpush1.xpose.msra.mxu0 0.0
    %305 = vmatprep.subr.mxu0 0.0
    %306 = vmatpush1.xpose.msra.mxu0 0.0
    %307 = vmatprep.subr.mxu0 0.0
    %308 = vmatpush1.xpose.msra.mxu0 0.0
    %309 = vmatprep.subr.mxu0 0.0
    %310 = vmatpush1.xpose.msra.mxu0 0.0
    %311 = vmatprep.subr.mxu0 0.0
    %312 = vmatpush1.xpose.msra.mxu0 0.0
    %313 = vmatprep.subr.mxu0 0.0
    %314 = vmatpush1.xpose.msra.mxu0 0.0
    %315 = vmatprep.subr.mxu0 0.0
    %316 = vmatpush1.xpose.msra.mxu0 0.0
    %317 = vmatprep.mubr.f32.mxu0 0.0
    %318 = vmatmul.mubr.f32.gmra.mrb[0].mxu0 %v221
    %v319 = vpop.f32.mrb[0].mxu0
    %v320 = vadd.f32 %v196, %v319
    %v321 = vpop.f32.mrb[0].mxu0
    %322 = vmatprep.mubr.f32.mxu0 0.0
    %323 = vmatmul.mubr.f32.gmra.mrb[0].mxu0 %v223
    %v324 = vpop.f32.mrb[0].mxu0
    %v325 = vadd.f32 %v197, %v324
    %v326 = vpop.f32.mrb[0].mxu0
    %327 = vmatprep.mubr.f32.mxu0 0.0
    %328 = vmatmul.mubr.f32.gmra.mrb[0].mxu0 %v225
    %v329 = vpop.f32.mrb[0].mxu0
    %v330 = vadd.f32 %v198, %v329
    %v331 = vpop.f32.mrb[0].mxu0
    %332 = vmatprep.mubr.f32.mxu0 0.0
    %333 = vmatmul.mubr.f32.gmra.mrb[0].mxu0 %v227
    %v334 = vpop.f32.mrb[0].mxu0
    %v335 = vadd.f32 %v199, %v334
    %v336 = vpop.f32.mrb[0].mxu0
    %337 = vmatprep.mubr.f32.mxu0 0.0
    %338 = vmatmul.mubr.f32.gmra.mrb[0].mxu0 %v229
    %v339 = vpop.f32.mrb[0].mxu0
    %v340 = vadd.f32 %v200, %v339
    %v341 = vpop.f32.mrb[0].mxu0
    %342 = vmatprep.mubr.f32.mxu0 0.0
    %343 = vmatmul.mubr.f32.gmra.mrb[0].mxu0 %v231
    %v344 = vpop.f32.mrb[0].mxu0
    %v345 = vadd.f32 %v201, %v344
    %v346 = vpop.f32.mrb[0].mxu0
    %347 = vmatprep.mubr.f32.mxu0 0.0
    %348 = vmatmul.mubr.f32.gmra.mrb[0].mxu0 %v233
    %v349 = vpop.f32.mrb[0].mxu0
    %v350 = vadd.f32 %v202, %v349
    %v351 = vpop.f32.mrb[0].mxu0
    %352 = vmatprep.mubr.f32.mxu0 0.0
    %353 = vmatmul.mubr.f32.gmra.mrb[0].mxu0 %v235
    %v354 = vpop.f32.mrb[0].mxu0
    %v355 = vadd.f32 %v203, %v354
    %v356 = vpop.f32.mrb[0].mxu0
    %357 = vdwg.mxu0
    %vm358 = vcmask 523264
    %v359 = vsel %vm358, %v320, -inf
    %360 = vmax.xlane.f32.xlu0 %v359
    %v361 = vpop.xlane.xlu0 %360
    %v362 = vsel %vm358, %v325, -inf
    %363 = vmax.xlane.f32.xlu0 %v362
    %v364 = vpop.xlane.xlu0 %363
    %v365 = vsel %vm358, %v330, -inf
    %366 = vmax.xlane.f32.xlu0 %v365
    %v367 = vpop.xlane.xlu0 %366
    %v368 = vsel %vm358, %v335, -inf
    %369 = vmax.xlane.f32.xlu0 %v368
    %v370 = vpop.xlane.xlu0 %369
    %v371 = vsel %vm358, %v340, -inf
    %372 = vmax.xlane.f32.xlu0 %v371
    %v373 = vpop.xlane.xlu0 %372
    %v374 = vsel %vm358, %v345, -inf
    %375 = vmax.xlane.f32.xlu0 %v374
    %v376 = vpop.xlane.xlu0 %375
    %v377 = vsel %vm358, %v350, -inf
    %378 = vmax.xlane.f32.xlu0 %v377
    %v379 = vpop.xlane.xlu0 %378
    %v380 = vsel %vm358, %v355, -inf
    %381 = vmax.xlane.f32.xlu0 %v380
    %v382 = vpop.xlane.xlu0 %381
    %v383 = vsub.f32 %v320, %v361
    %v384 = vsub.f32 %v325, %v364
    %v385 = vsub.f32 %v330, %v367
    %v386 = vsub.f32 %v335, %v370
    %v387 = vsub.f32 %v340, %v373
    %v388 = vsub.f32 %v345, %v376
    %v389 = vsub.f32 %v350, %v379
    %v390 = vsub.f32 %v355, %v382
    %v391 = vmul.f32 %v383, 1.442695
    %v392 = vpow.pop %v391
    %v393 = vmul.f32 %v384, 1.442695
    %v394 = vpow.pop %v393
    %v395 = vmul.f32 %v385, 1.442695
    %v396 = vpow.pop %v395
    %v397 = vmul.f32 %v386, 1.442695
    %v398 = vpow.pop %v397
    %v399 = vmul.f32 %v387, 1.442695
    %v400 = vpow.pop %v399
    %v401 = vmul.f32 %v388, 1.442695
    %v402 = vpow.pop %v401
    %v403 = vmul.f32 %v389, 1.442695
    %v404 = vpow.pop %v403
    %v405 = vmul.f32 %v390, 1.442695
    %v406 = vpow.pop %v405
    %v407 = vsel %vm358, %v392, 0.0
    %408 = vadd.xlane.f32.xlu0 %v407
    %v409 = vpop.xlane.xlu0 %408
    %v410 = vsel %vm358, %v394, 0.0
    %411 = vadd.xlane.f32.xlu0 %v410
    %v412 = vpop.xlane.xlu0 %411
    %v413 = vsel %vm358, %v396, 0.0
    %414 = vadd.xlane.f32.xlu0 %v413
    %v415 = vpop.xlane.xlu0 %414
    %v416 = vsel %vm358, %v398, 0.0
    %417 = vadd.xlane.f32.xlu0 %v416
    %v418 = vpop.xlane.xlu0 %417
    %v419 = vsel %vm358, %v400, 0.0
    %420 = vadd.xlane.f32.xlu0 %v419
    %v421 = vpop.xlane.xlu0 %420
    %v422 = vsel %vm358, %v402, 0.0
    %423 = vadd.xlane.f32.xlu0 %v422
    %v424 = vpop.xlane.xlu0 %423
    %v425 = vsel %vm358, %v404, 0.0
    %426 = vadd.xlane.f32.xlu0 %v425
    %v427 = vpop.xlane.xlu0 %426
    %v428 = vsel %vm358, %v406, 0.0
    %429 = vadd.xlane.f32.xlu0 %v428
    %v430 = vpop.xlane.xlu0 %429
    %v431 = vrcp.pop %v409
    %v432 = vrcp.pop %v412
    %v433 = vrcp.pop %v415
    %v434 = vrcp.pop %v418
    %v435 = vrcp.pop %v421
    %v436 = vrcp.pop %v424
    %v437 = vrcp.pop %v427
    %v438 = vrcp.pop %v430
    %v439 = vmul.f32 %v392, %v431
    %v440 = vmul.f32 %v394, %v432
    %v441 = vmul.f32 %v396, %v433
    %v442 = vmul.f32 %v398, %v434
    %v443 = vmul.f32 %v400, %v435
    %v444 = vmul.f32 %v402, %v436
    %v445 = vmul.f32 %v404, %v437
    %v446 = vmul.f32 %v406, %v438
    %447 = vrot.lane.b32.xlu0 %v174, 112
    %v448 = vpop.permute.xlu0 %447
    %449 = vrot.lane.b32.xlu0 %v179, 112
    %v450 = vpop.permute.xlu0 %449
    %451 = vrot.lane.b32.xlu0 %v185, 112
    %v452 = vpop.permute.xlu0 %451
    %453 = vrot.lane.b32.xlu0 %v187, 112
    %v454 = vpop.permute.xlu0 %453
    %455 = vrot.lane.b32.xlu0 %v189, 112
    %v456 = vpop.permute.xlu0 %455
    %457 = vrot.lane.b32.xlu0 %v191, 112
    %v458 = vpop.permute.xlu0 %457
    %459 = vrot.lane.b32.xlu0 %v193, 112
    %v460 = vpop.permute.xlu0 %459
    %461 = vrot.lane.b32.xlu0 %v195, 112
    %v462 = vpop.permute.xlu0 %461
    %v472 = vsel %vm358, %v439, 0
    %v475 = vsel %vm358, %v440, 0
    %v478 = vsel %vm358, %v441, 0
    %v481 = vsel %vm358, %v442, 0
    %v484 = vsel %vm358, %v443, 0
    %v487 = vsel %vm358, %v444, 0
    %v490 = vsel %vm358, %v445, 0
    %v493 = vsel %vm358, %v446, 0
    %495 = vmatprep.subr.mxu0 0.0
    %496 = vmatpush1.msra.mxu0 %v448
    %497 = vmatprep.subr.mxu0 0.0
    %498 = vmatpush1.msra.mxu0 %v450
    %499 = vmatprep.subr.mxu0 0.0
    %500 = vmatpush1.msra.mxu0 %v452
    %501 = vmatprep.subr.mxu0 0.0
    %502 = vmatpush1.msra.mxu0 %v454
    %503 = vmatprep.subr.mxu0 0.0
    %504 = vmatpush1.msra.mxu0 %v456
    %505 = vmatprep.subr.mxu0 0.0
    %506 = vmatpush1.msra.mxu0 %v458
    %507 = vmatprep.subr.mxu0 0.0
    %508 = vmatpush1.msra.mxu0 %v460
    %509 = vmatprep.subr.mxu0 0.0
    %510 = vmatpush1.msra.mxu0 %v462
    %511 = vmatprep.subr.mxu0 0.0
    %512 = vmatpush1.msra.mxu0 0.0
    %513 = vmatprep.subr.mxu0 0.0
    %514 = vmatpush1.msra.mxu0 0.0
    %515 = vmatprep.subr.mxu0 0.0
    %516 = vmatpush1.msra.mxu0 0.0
    %517 = vmatprep.subr.mxu0 0.0
    %518 = vmatpush1.msra.mxu0 0.0
    %519 = vmatprep.subr.mxu0 0.0
    %520 = vmatpush1.msra.mxu0 0.0
    %521 = vmatprep.subr.mxu0 0.0
    %522 = vmatpush1.msra.mxu0 0.0
    %523 = vmatprep.subr.mxu0 0.0
    %524 = vmatpush1.msra.mxu0 0.0
    %525 = vmatprep.subr.mxu0 0.0
    %526 = vmatpush1.msra.mxu0 0.0
    %527 = vmatprep.subr.mxu0 0.0
    %528 = vmatpush1.msra.mxu0 0.0
    %529 = vmatprep.subr.mxu0 0.0
    %530 = vmatpush1.msra.mxu0 0.0
    %531 = vmatprep.subr.mxu0 0.0
    %532 = vmatpush1.msra.mxu0 0.0
    %533 = vmatprep.subr.mxu0 0.0
    %534 = vmatpush1.msra.mxu0 0.0
    %535 = vmatprep.subr.mxu0 0.0
    %536 = vmatpush1.msra.mxu0 0.0
    %537 = vmatprep.subr.mxu0 0.0
    %538 = vmatpush1.msra.mxu0 0.0
    %539 = vmatprep.subr.mxu0 0.0
    %540 = vmatpush1.msra.mxu0 0.0
    %541 = vmatprep.subr.mxu0 0.0
    %542 = vmatpush1.msra.mxu0 0.0
    %543 = vmatprep.subr.mxu0 0.0
    %544 = vmatpush1.msra.mxu0 0.0
    %545 = vmatprep.subr.mxu0 0.0
    %546 = vmatpush1.msra.mxu0 0.0
    %547 = vmatprep.subr.mxu0 0.0
    %548 = vmatpush1.msra.mxu0 0.0
    %549 = vmatprep.subr.mxu0 0.0
    %550 = vmatpush1.msra.mxu0 0.0
    %551 = vmatprep.subr.mxu0 0.0
    %552 = vmatpush1.msra.mxu0 0.0
    %553 = vmatprep.subr.mxu0 0.0
    %554 = vmatpush1.msra.mxu0 0.0
    %555 = vmatprep.subr.mxu0 0.0
    %556 = vmatpush1.msra.mxu0 0.0
    %557 = vmatprep.subr.mxu0 0.0
    %558 = vmatpush1.msra.mxu0 0.0
    %559 = vmatprep.mubr.f32.mxu0 0.0
    %560 = vmatmul.mubr.f32.gmra.mrb[0].mxu0 %v472
    %v561 = vpop.f32.mrb[0].mxu0
    %v562 = vadd.f32 0.0, %v561
    %v563 = vpop.f32.mrb[0].mxu0
    %564 = vmatprep.mubr.f32.mxu0 0.0
    %565 = vmatmul.mubr.f32.gmra.mrb[0].mxu0 %v475
    %v566 = vpop.f32.mrb[0].mxu0
    %v567 = vadd.f32 0.0, %v566
    %v568 = vpop.f32.mrb[0].mxu0
    %569 = vmatprep.mubr.f32.mxu0 0.0
    %570 = vmatmul.mubr.f32.gmra.mrb[0].mxu0 %v478
    %v571 = vpop.f32.mrb[0].mxu0
    %v572 = vadd.f32 0.0, %v571
    %v573 = vpop.f32.mrb[0].mxu0
    %574 = vmatprep.mubr.f32.mxu0 0.0
    %575 = vmatmul.mubr.f32.gmra.mrb[0].mxu0 %v481
    %v576 = vpop.f32.mrb[0].mxu0
    %v577 = vadd.f32 0.0, %v576
    %v578 = vpop.f32.mrb[0].mxu0
    %579 = vmatprep.mubr.f32.mxu0 0.0
    %580 = vmatmul.mubr.f32.gmra.mrb[0].mxu0 %v484
    %v581 = vpop.f32.mrb[0].mxu0
    %v582 = vadd.f32 0.0, %v581
    %v583 = vpop.f32.mrb[0].mxu0
    %584 = vmatprep.mubr.f32.mxu0 0.0
    %585 = vmatmul.mubr.f32.gmra.mrb[0].mxu0 %v487
    %v586 = vpop.f32.mrb[0].mxu0
    %v587 = vadd.f32 0.0, %v586
    %v588 = vpop.f32.mrb[0].mxu0
    %589 = vmatprep.mubr.f32.mxu0 0.0
    %590 = vmatmul.mubr.f32.gmra.mrb[0].mxu0 %v490
    %v591 = vpop.f32.mrb[0].mxu0
    %v592 = vadd.f32 0.0, %v591
    %v593 = vpop.f32.mrb[0].mxu0
    %594 = vmatprep.mubr.f32.mxu0 0.0
    %595 = vmatmul.mubr.f32.gmra.mrb[0].mxu0 %v493
    %v596 = vpop.f32.mrb[0].mxu0
    %v597 = vadd.f32 0.0, %v596
    %v598 = vpop.f32.mrb[0].mxu0
    %599 = vdwg.mxu0
    %v600 = vld [vmem:[#allocation8] sm:$0xff]
    %v601 = vld [vmem:[#allocation8 + $0x8] sm:$0xff]
    %v602 = vld [vmem:[#allocation8 + $0x10] sm:$0xff]
    %v603 = vld [vmem:[#allocation8 + $0x18] sm:$0xff]
    %v605 = vsel %vm220, %v562, 0
    %v608 = vsel %vm220, %v567, 0
    %610 = vmatprep.subr.mxu0 0.0
    %611 = vmatpush1.msra.mxu0 %v600
    %612 = vmatprep.subr.mxu0 0.0
    %613 = vmatpush1.msra.mxu0 0.0
    %614 = vmatprep.subr.mxu0 0.0
    %615 = vmatpush1.msra.mxu0 0.0
    %616 = vmatprep.subr.mxu0 0.0
    %617 = vmatpush1.msra.mxu0 0.0
    %618 = vmatprep.subr.mxu0 0.0
    %619 = vmatpush1.msra.mxu0 0.0
    %620 = vmatprep.subr.mxu0 0.0
    %621 = vmatpush1.msra.mxu0 0.0
    %622 = vmatprep.subr.mxu0 0.0
    %623 = vmatpush1.msra.mxu0 0.0
    %624 = vmatprep.subr.mxu0 0.0
    %625 = vmatpush1.msra.mxu0 0.0
    %626 = vmatprep.subr.mxu0 0.0
    %627 = vmatpush1.msra.mxu0 0.0
    %628 = vmatprep.subr.mxu0 0.0
    %629 = vmatpush1.msra.mxu0 0.0
    %630 = vmatprep.subr.mxu0 0.0
    %631 = vmatpush1.msra.mxu0 0.0
    %632 = vmatprep.subr.mxu0 0.0
    %633 = vmatpush1.msra.mxu0 0.0
    %634 = vmatprep.subr.mxu0 0.0
    %635 = vmatpush1.msra.mxu0 0.0
    %636 = vmatprep.subr.mxu0 0.0
    %637 = vmatpush1.msra.mxu0 0.0
    %638 = vmatprep.subr.mxu0 0.0
    %639 = vmatpush1.msra.mxu0 0.0
    %640 = vmatprep.subr.mxu0 0.0
    %641 = vmatpush1.msra.mxu0 0.0
    %642 = vmatprep.subr.mxu0 0.0
    %643 = vmatpush1.msra.mxu0 0.0
    %644 = vmatprep.subr.mxu0 0.0
    %645 = vmatpush1.msra.mxu0 0.0
    %646 = vmatprep.subr.mxu0 0.0
    %647 = vmatpush1.msra.mxu0 0.0
    %648 = vmatprep.subr.mxu0 0.0
    %649 = vmatpush1.msra.mxu0 0.0
    %650 = vmatprep.subr.mxu0 0.0
    %651 = vmatpush1.msra.mxu0 0.0
    %652 = vmatprep.subr.mxu0 0.0
    %653 = vmatpush1.msra.mxu0 0.0
    %654 = vmatprep.subr.mxu0 0.0
    %655 = vmatpush1.msra.mxu0 0.0
    %656 = vmatprep.subr.mxu0 0.0
    %657 = vmatpush1.msra.mxu0 0.0
    %658 = vmatprep.subr.mxu0 0.0
    %659 = vmatpush1.msra.mxu0 0.0
    %660 = vmatprep.subr.mxu0 0.0
    %661 = vmatpush1.msra.mxu0 0.0
    %662 = vmatprep.subr.mxu0 0.0
    %663 = vmatpush1.msra.mxu0 0.0
    %664 = vmatprep.subr.mxu0 0.0
    %665 = vmatpush1.msra.mxu0 0.0
    %666 = vmatprep.subr.mxu0 0.0
    %667 = vmatpush1.msra.mxu0 0.0
    %668 = vmatprep.subr.mxu0 0.0
    %669 = vmatpush1.msra.mxu0 0.0
    %670 = vmatprep.subr.mxu0 0.0
    %671 = vmatpush1.msra.mxu0 0.0
    %672 = vmatprep.subr.mxu0 0.0
    %673 = vmatpush1.msra.mxu0 0.0
    %674 = vmatprep.mubr.f32.mxu0 0.0
    %675 = vmatmul.mubr.f32.gmra.mrb[0].mxu0 %v605
    %v676 = vpop.f32.mrb[0].mxu0
    %v677 = vadd.f32 0.0, %v676
    %v678 = vpop.f32.mrb[0].mxu0
    %679 = vmatprep.mubr.f32.mxu0 0.0
    %680 = vmatmul.mubr.f32.gmra.mrb[0].mxu0 %v608
    %v681 = vpop.f32.mrb[0].mxu0
    %v682 = vadd.f32 0.0, %v681
    %v683 = vpop.f32.mrb[0].mxu0
    %684 = vdwg.mxu0
    %v686 = vsel %vm220, %v572, 0
    %v689 = vsel %vm220, %v577, 0
    %691 = vmatprep.subr.mxu0 0.0
    %692 = vmatpush1.msra.mxu0 %v601
    %693 = vmatprep.subr.mxu0 0.0
    %694 = vmatpush1.msra.mxu0 0.0
    %695 = vmatprep.subr.mxu0 0.0
    %696 = vmatpush1.msra.mxu0 0.0
    %697 = vmatprep.subr.mxu0 0.0
    %698 = vmatpush1.msra.mxu0 0.0
    %699 = vmatprep.subr.mxu0 0.0
    %700 = vmatpush1.msra.mxu0 0.0
    %701 = vmatprep.subr.mxu0 0.0
    %702 = vmatpush1.msra.mxu0 0.0
    %703 = vmatprep.subr.mxu0 0.0
    %704 = vmatpush1.msra.mxu0 0.0
    %705 = vmatprep.subr.mxu0 0.0
    %706 = vmatpush1.msra.mxu0 0.0
    %707 = vmatprep.subr.mxu0 0.0
    %708 = vmatpush1.msra.mxu0 0.0
    %709 = vmatprep.subr.mxu0 0.0
    %710 = vmatpush1.msra.mxu0 0.0
    %711 = vmatprep.subr.mxu0 0.0
    %712 = vmatpush1.msra.mxu0 0.0
    %713 = vmatprep.subr.mxu0 0.0
    %714 = vmatpush1.msra.mxu0 0.0
    %715 = vmatprep.subr.mxu0 0.0
    %716 = vmatpush1.msra.mxu0 0.0
    %717 = vmatprep.subr.mxu0 0.0
    %718 = vmatpush1.msra.mxu0 0.0
    %719 = vmatprep.subr.mxu0 0.0
    %720 = vmatpush1.msra.mxu0 0.0
    %721 = vmatprep.subr.mxu0 0.0
    %722 = vmatpush1.msra.mxu0 0.0
    %723 = vmatprep.subr.mxu0 0.0
    %724 = vmatpush1.msra.mxu0 0.0
    %725 = vmatprep.subr.mxu0 0.0
    %726 = vmatpush1.msra.mxu0 0.0
    %727 = vmatprep.subr.mxu0 0.0
    %728 = vmatpush1.msra.mxu0 0.0
    %729 = vmatprep.subr.mxu0 0.0
    %730 = vmatpush1.msra.mxu0 0.0
    %731 = vmatprep.subr.mxu0 0.0
    %732 = vmatpush1.msra.mxu0 0.0
    %733 = vmatprep.subr.mxu0 0.0
    %734 = vmatpush1.msra.mxu0 0.0
    %735 = vmatprep.subr.mxu0 0.0
    %736 = vmatpush1.msra.mxu0 0.0
    %737 = vmatprep.subr.mxu0 0.0
    %738 = vmatpush1.msra.mxu0 0.0
    %739 = vmatprep.subr.mxu0 0.0
    %740 = vmatpush1.msra.mxu0 0.0
    %741 = vmatprep.subr.mxu0 0.0
    %742 = vmatpush1.msra.mxu0 0.0
    %743 = vmatprep.subr.mxu0 0.0
    %744 = vmatpush1.msra.mxu0 0.0
    %745 = vmatprep.subr.mxu0 0.0
    %746 = vmatpush1.msra.mxu0 0.0
    %747 = vmatprep.subr.mxu0 0.0
    %748 = vmatpush1.msra.mxu0 0.0
    %749 = vmatprep.subr.mxu0 0.0
    %750 = vmatpush1.msra.mxu0 0.0
    %751 = vmatprep.subr.mxu0 0.0
    %752 = vmatpush1.msra.mxu0 0.0
    %753 = vmatprep.subr.mxu0 0.0
    %754 = vmatpush1.msra.mxu0 0.0
    %755 = vmatprep.mubr.f32.mxu0 0.0
    %756 = vmatmul.mubr.f32.gmra.mrb[0].mxu0 %v686
    %v757 = vpop.f32.mrb[0].mxu0
    %v758 = vadd.f32 0.0, %v757
    %v759 = vpop.f32.mrb[0].mxu0
    %760 = vmatprep.mubr.f32.mxu0 0.0
    %761 = vmatmul.mubr.f32.gmra.mrb[0].mxu0 %v689
    %v762 = vpop.f32.mrb[0].mxu0
    %v763 = vadd.f32 0.0, %v762
    %v764 = vpop.f32.mrb[0].mxu0
    %765 = vdwg.mxu0
    %v767 = vsel %vm220, %v582, 0
    %v770 = vsel %vm220, %v587, 0
    %772 = vmatprep.subr.mxu0 0.0
    %773 = vmatpush1.msra.mxu0 %v602
    %774 = vmatprep.subr.mxu0 0.0
    %775 = vmatpush1.msra.mxu0 0.0
    %776 = vmatprep.subr.mxu0 0.0
    %777 = vmatpush1.msra.mxu0 0.0
    %778 = vmatprep.subr.mxu0 0.0
    %779 = vmatpush1.msra.mxu0 0.0
    %780 = vmatprep.subr.mxu0 0.0
    %781 = vmatpush1.msra.mxu0 0.0
    %782 = vmatprep.subr.mxu0 0.0
    %783 = vmatpush1.msra.mxu0 0.0
    %784 = vmatprep.subr.mxu0 0.0
    %785 = vmatpush1.msra.mxu0 0.0
    %786 = vmatprep.subr.mxu0 0.0
    %787 = vmatpush1.msra.mxu0 0.0
    %788 = vmatprep.subr.mxu0 0.0
    %789 = vmatpush1.msra.mxu0 0.0
    %790 = vmatprep.subr.mxu0 0.0
    %791 = vmatpush1.msra.mxu0 0.0
    %792 = vmatprep.subr.mxu0 0.0
    %793 = vmatpush1.msra.mxu0 0.0
    %794 = vmatprep.subr.mxu0 0.0
    %795 = vmatpush1.msra.mxu0 0.0
    %796 = vmatprep.subr.mxu0 0.0
    %797 = vmatpush1.msra.mxu0 0.0
    %798 = vmatprep.subr.mxu0 0.0
    %799 = vmatpush1.msra.mxu0 0.0
    %800 = vmatprep.subr.mxu0 0.0
    %801 = vmatpush1.msra.mxu0 0.0
    %802 = vmatprep.subr.mxu0 0.0
    %803 = vmatpush1.msra.mxu0 0.0
    %804 = vmatprep.subr.mxu0 0.0
    %805 = vmatpush1.msra.mxu0 0.0
    %806 = vmatprep.subr.mxu0 0.0
    %807 = vmatpush1.msra.mxu0 0.0
    %808 = vmatprep.subr.mxu0 0.0
    %809 = vmatpush1.msra.mxu0 0.0
    %810 = vmatprep.subr.mxu0 0.0
    %811 = vmatpush1.msra.mxu0 0.0
    %812 = vmatprep.subr.mxu0 0.0
    %813 = vmatpush1.msra.mxu0 0.0
    %814 = vmatprep.subr.mxu0 0.0
    %815 = vmatpush1.msra.mxu0 0.0
    %816 = vmatprep.subr.mxu0 0.0
    %817 = vmatpush1.msra.mxu0 0.0
    %818 = vmatprep.subr.mxu0 0.0
    %819 = vmatpush1.msra.mxu0 0.0
    %820 = vmatprep.subr.mxu0 0.0
    %821 = vmatpush1.msra.mxu0 0.0
    %822 = vmatprep.subr.mxu0 0.0
    %823 = vmatpush1.msra.mxu0 0.0
    %824 = vmatprep.subr.mxu0 0.0
    %825 = vmatpush1.msra.mxu0 0.0
    %826 = vmatprep.subr.mxu0 0.0
    %827 = vmatpush1.msra.mxu0 0.0
    %828 = vmatprep.subr.mxu0 0.0
    %829 = vmatpush1.msra.mxu0 0.0
    %830 = vmatprep.subr.mxu0 0.0
    %831 = vmatpush1.msra.mxu0 0.0
    %832 = vmatprep.subr.mxu0 0.0
    %833 = vmatpush1.msra.mxu0 0.0
    %834 = vmatprep.subr.mxu0 0.0
    %835 = vmatpush1.msra.mxu0 0.0
    %836 = vmatprep.mubr.f32.mxu0 0.0
    %837 = vmatmul.mubr.f32.gmra.mrb[0].mxu0 %v767
    %v838 = vpop.f32.mrb[0].mxu0
    %v839 = vadd.f32 0.0, %v838
    %v840 = vpop.f32.mrb[0].mxu0
    %841 = vmatprep.mubr.f32.mxu0 0.0
    %842 = vmatmul.mubr.f32.gmra.mrb[0].mxu0 %v770
    %v843 = vpop.f32.mrb[0].mxu0
    %v844 = vadd.f32 0.0, %v843
    %v845 = vpop.f32.mrb[0].mxu0
    %846 = vdwg.mxu0
    %v848 = vsel %vm220, %v592, 0
    %v851 = vsel %vm220, %v597, 0
    %853 = vmatprep.subr.mxu0 0.0
    %854 = vmatpush1.msra.mxu0 %v603
    %855 = vmatprep.subr.mxu0 0.0
    %856 = vmatpush1.msra.mxu0 0.0
    %857 = vmatprep.subr.mxu0 0.0
    %858 = vmatpush1.msra.mxu0 0.0
    %859 = vmatprep.subr.mxu0 0.0
    %860 = vmatpush1.msra.mxu0 0.0
    %861 = vmatprep.subr.mxu0 0.0
    %862 = vmatpush1.msra.mxu0 0.0
    %863 = vmatprep.subr.mxu0 0.0
    %864 = vmatpush1.msra.mxu0 0.0
    %865 = vmatprep.subr.mxu0 0.0
    %866 = vmatpush1.msra.mxu0 0.0
    %867 = vmatprep.subr.mxu0 0.0
    %868 = vmatpush1.msra.mxu0 0.0
    %869 = vmatprep.subr.mxu0 0.0
    %870 = vmatpush1.msra.mxu0 0.0
    %871 = vmatprep.subr.mxu0 0.0
    %872 = vmatpush1.msra.mxu0 0.0
    %873 = vmatprep.subr.mxu0 0.0
    %874 = vmatpush1.msra.mxu0 0.0
    %875 = vmatprep.subr.mxu0 0.0
    %876 = vmatpush1.msra.mxu0 0.0
    %877 = vmatprep.subr.mxu0 0.0
    %878 = vmatpush1.msra.mxu0 0.0
    %879 = vmatprep.subr.mxu0 0.0
    %880 = vmatpush1.msra.mxu0 0.0
    %881 = vmatprep.subr.mxu0 0.0
    %882 = vmatpush1.msra.mxu0 0.0
    %883 = vmatprep.subr.mxu0 0.0
    %884 = vmatpush1.msra.mxu0 0.0
    %885 = vmatprep.subr.mxu0 0.0
    %886 = vmatpush1.msra.mxu0 0.0
    %887 = vmatprep.subr.mxu0 0.0
    %888 = vmatpush1.msra.mxu0 0.0
    %889 = vmatprep.subr.mxu0 0.0
    %890 = vmatpush1.msra.mxu0 0.0
    %891 = vmatprep.subr.mxu0 0.0
    %892 = vmatpush1.msra.mxu0 0.0
    %893 = vmatprep.subr.mxu0 0.0
    %894 = vmatpush1.msra.mxu0 0.0
    %895 = vmatprep.subr.mxu0 0.0
    %896 = vmatpush1.msra.mxu0 0.0
    %897 = vmatprep.subr.mxu0 0.0
    %898 = vmatpush1.msra.mxu0 0.0
    %899 = vmatprep.subr.mxu0 0.0
    %900 = vmatpush1.msra.mxu0 0.0
    %901 = vmatprep.subr.mxu0 0.0
    %902 = vmatpush1.msra.mxu0 0.0
    %903 = vmatprep.subr.mxu0 0.0
    %904 = vmatpush1.msra.mxu0 0.0
    %905 = vmatprep.subr.mxu0 0.0
    %906 = vmatpush1.msra.mxu0 0.0
    %907 = vmatprep.subr.mxu0 0.0
    %908 = vmatpush1.msra.mxu0 0.0
    %909 = vmatprep.subr.mxu0 0.0
    %910 = vmatpush1.msra.mxu0 0.0
    %911 = vmatprep.subr.mxu0 0.0
    %912 = vmatpush1.msra.mxu0 0.0
    %913 = vmatprep.subr.mxu0 0.0
    %914 = vmatpush1.msra.mxu0 0.0
    %915 = vmatprep.subr.mxu0 0.0
    %916 = vmatpush1.msra.mxu0 0.0
    %917 = vmatprep.mubr.f32.mxu0 0.0
    %918 = vmatmul.mubr.f32.gmra.mrb[0].mxu0 %v848
    %v919 = vpop.f32.mrb[0].mxu0
    %v920 = vadd.f32 0.0, %v919
    %v921 = vpop.f32.mrb[0].mxu0
    %922 = vmatprep.mubr.f32.mxu0 0.0
    %923 = vmatmul.mubr.f32.gmra.mrb[0].mxu0 %v851
    %v924 = vpop.f32.mrb[0].mxu0
    %v925 = vadd.f32 0.0, %v924
    %v926 = vpop.f32.mrb[0].mxu0
    %927 = vdwg.mxu0
    %v928 = vadd.f32 %v677, %v758
    %v929 = vadd.f32 %v682, %v763
    %v930 = vadd.f32 %v928, %v839
    %v931 = vadd.f32 %v929, %v844
    %v932 = vadd.f32 %v930, %v920
    %v933 = vadd.f32 %v931, %v925
    %v934 = vld [vmem:[%s4] sm:$0xff]
    %v935 = vld [vmem:[%s4 + $0x8] sm:$0xff]
    %v936 = vadd.f32 %v932, %v934
    %v937 = vadd.f32 %v933, %v935
    %938 = vst.msk [vmem:[#allocation11] sm:$0xff] %vm100, %v936
    %939 = vst.msk [vmem:[#allocation11 + $0x8] sm:$0xff] %vm100, %v937
    // Predicated region
    $region46: #{attention_forward.1} parent=1 // pred_check
      _
    $region47: #{attention_forward.1} parent=1 // pred_check_branch
      %941 = sbr.rel (0) target = $region49
    $region48: #{attention_forward.1} parent=1 // pred_region
      %s943 = ssub.s32 256, 256
      %944 = vsyncadd [#allocation4], %s943
      %s945 = sshll.u32 [#allocation11], 4
      %s946 = int_to_ptr.vmem [resolvable:$true] %s945
      %951 = dma.vmem_to_hbm [thread:$0]  %s946, 256, %s6, [#allocation4], 128, 128, 8
    $region49: #{attention_forward.1} parent=1 // pred_fallthru
      _
    // Predicated region
    $region50: #{attention_forward.1} parent=1 // pred_check
      _
    $region51: #{attention_forward.1} parent=1 // pred_check_branch
      %953 = sbr.rel (0) target = $region53
    $region52: #{attention_forward.1} parent=1 // pred_region
      %954 = dma.done [#allocation4], 256
    $region53: #{attention_forward.1} parent=1 // pred_fallthru
      _
    %955 = vsyncpa [#allocation3], 1
    %956 = vsyncpa [#allocation6], 1
    %957 = vsyncpa [#allocation9], 1
    %958 = vsyncpa [#allocation4], 1

</llo_original>
